<compile_context>
chip_gen: v7x
topology: tpu7x:2x2x1
jax: 0.10.0
libtpu: 0.0.40
codegen_flags: <defaults>
</compile_context>

<pallas_src>
import functools

import jax
import jax.numpy as jnp
from jax.experimental import pallas as pl
from jax.experimental.pallas import tpu as pltpu


def _round_up(x: int, m: int) -> int:
    return ((x + m - 1) // m) * m


def _downsampled_encoder_kernel(d_ref, u_ref, src_ref, scale_ref, out_ref, *,
                                seq_len: int, block_rows: int):
    """One time-tile of the fused downsample/encoder/upsample/bypass op.

    d_ref    : (nwin, block_rows)  block-diag downsample operator (softmax(bias))
    u_ref    : (block_rows, nwin)  block-diag 0/1 upsample (repeat) operator
    src_ref  : (block_rows, F)     time tile of src, F = batch * channels
    scale_ref: (1, F)              bypass scale (per-channel, tiled over batch)
    out_ref  : (block_rows, F)
    """
    base = pl.program_id(0) * block_rows

    x = src_ref[...].astype(jnp.float32)                              # (R, F)

    # Rows at/after seq_len (module tail padding + Pallas grid padding) must
    # behave like replicas of the last real frame (SimpleDownsample expand+cat).
    row = base + jax.lax.broadcasted_iota(jnp.int32, (block_rows, 1), 0)
    last_local = jnp.clip(seq_len - 1 - base, 0, block_rows - 1)
    x_last = src_ref[pl.ds(last_local, 1), :].astype(jnp.float32)     # (1, F)
    x = jnp.where(row < seq_len, x, jnp.broadcast_to(x_last, x.shape))

    # --- SimpleDownsample: per-window weighted sum (f32 accumulation, MXU) ---
    down = jnp.dot(d_ref[...], x, preferred_element_type=jnp.float32)  # (nwin, F)

    # --- encoder: identity stand-in (see TODO at top of file) ---
    enc = down

    # --- SimpleUpsample: repeat each downsampled frame ds times (0/1 matrix) ---
    up = jnp.dot(u_ref[...], enc, preferred_element_type=jnp.float32)  # (R, F)

    # --- BypassModule (eval mode): out = src + (up - src) * scale ---
    scale = jnp.broadcast_to(scale_ref[...].astype(jnp.float32), x.shape)
    out_ref[...] = (x + (up - x) * scale).astype(out_ref.dtype)


def downsampled_zipformer2_encoder(src: jax.Array,
                                   downsample: int,
                                   downsample_bias: jax.Array,
                                   bypass_scale: jax.Array,
                                   attn_mask=None) -> jax.Array:
    """Forward pass of DownsampledZipformer2Encoder (eval mode).

    src             : (seq_len, batch, channels)
    downsample_bias : (downsample,)      -- SimpleDownsample.bias
    bypass_scale    : (channels,)        -- BypassModule.bypass_scale
    """
    seq_len, batch, channels = src.shape
    ds = int(downsample)
    d_seq_len = (seq_len + ds - 1) // ds
    f_dim = batch * channels

    # Lane-dense 2-D layout: (seq_len, batch*channels).  Free bitcast.
    src2d = src.reshape(seq_len, f_dim)

    # --- choose a time tile: whole downsample windows, block_rows % 8 == 0 ---
    row_bytes = f_dim * src.dtype.itemsize
    target_block_bytes = 2 * 1024 * 1024          # ~2 MiB/tile; 4 tiles < 16 MiB
    nwin = target_block_bytes // max(1, row_bytes * ds)
    nwin = max(8, min(48, (nwin // 8) * 8))       # cap keeps the MXU work hidden
    nwin = min(nwin, _round_up(d_seq_len, 8))
    block_rows = nwin * ds
    grid = (pl.cdiv(d_seq_len, nwin),)

    # Parameter-derived constant operators (tiny, resident in VMEM):
    #   d_mat @ x : weighted sum of each ds-window with softmax(bias) weights
    #   u_mat @ y : repeat every downsampled frame ds times
    weights = jax.nn.softmax(downsample_bias.astype(jnp.float32), axis=0)  # (ds,)
    eye = jnp.eye(nwin, dtype=jnp.float32)
    d_mat = jnp.kron(eye, weights[None, :])                   # (nwin, block_rows)
    u_mat = jnp.kron(eye, jnp.ones((ds, 1), jnp.float32))     # (block_rows, nwin)

    # Per-channel bypass scale, tiled over batch to match the flattened layout.
    scale2d = jnp.tile(bypass_scale.astype(jnp.float32), batch).reshape(1, f_dim)

    if attn_mask is not None:
        # Would be handed to the (identity) encoder; kept for API parity.
        attn_mask = attn_mask[::ds, ::ds]

    kernel = functools.partial(_downsampled_encoder_kernel,
                               seq_len=seq_len, block_rows=block_rows)

    out2d = pl.pallas_call(
        kernel,
        out_shape=jax.ShapeDtypeStruct((seq_len, f_dim), src.dtype),
        grid=grid,
        in_specs=[
            pl.BlockSpec((nwin, block_rows), lambda i: (0, 0)),   # d_mat (resident)
            pl.BlockSpec((block_rows, nwin), lambda i: (0, 0)),   # u_mat (resident)
            pl.BlockSpec((block_rows, f_dim), lambda i: (i, 0)),  # src time tile
            pl.BlockSpec((1, f_dim), lambda i: (0, 0)),           # bypass scale
        ],
        out_specs=pl.BlockSpec((block_rows, f_dim), lambda i: (i, 0)),
        compiler_params=pltpu.CompilerParams(
            dimension_semantics=("parallel",),
            vmem_limit_bytes=32 * 1024 * 1024,
        ),
    )(d_mat, u_mat, src2d, scale2d)

    return out2d.reshape(seq_len, batch, channels)


def _reference(src, downsample, downsample_bias, bypass_scale):
    """Plain-JAX reference mirroring the PyTorch forward (eval mode)."""
    seq_len, batch, channels = src.shape
    ds = downsample
    d_seq_len = (seq_len + ds - 1) // ds
    pad = d_seq_len * ds - seq_len
    sp = jnp.concatenate(
        [src, jnp.broadcast_to(src[-1:], (pad, batch, channels))], axis=0)
    sp = sp.reshape(d_seq_len, ds, batch, channels)
    w = jax.nn.softmax(downsample_bias.astype(jnp.float32))[None, :, None, None]
    down = (sp * w).sum(axis=1)                     # SimpleDownsample
    enc = down                                      # identity encoder
    up = jnp.repeat(enc, ds, axis=0)[:seq_len]      # SimpleUpsample + truncate
    return src + (up - src) * bypass_scale[None, None, :]   # BypassModule


if __name__ == "__main__":
    key = jax.random.PRNGKey(0)
    k1, k2, k3, k4 = jax.random.split(key, 4)

    # Case 1: module-default parameter init (bias = zeros, bypass_scale = 0.5),
    # small shapes, tail padding inside a single grid block.
    seq_len, batch, channels, ds = 10, 2, 32, 3
    src = jax.random.normal(k1, (seq_len, batch, channels), dtype=jnp.float32)
    bias = jnp.zeros((ds,), dtype=jnp.float32)
    scale = jnp.full((channels,), 0.5, dtype=jnp.float32)
    out = jax.block_until_ready(
        downsampled_zipformer2_encoder(src, ds, bias, scale))
    ref = _reference(src, ds, bias, scale)
    assert out.shape == src.shape and out.dtype == src.dtype
    assert jnp.allclose(out, ref, atol=1e-4, rtol=1e-4), "case 1 mismatch"

    # Case 2: multi-block grid, non-trivial parameters, lane-dense F, tail window.
    seq_len, batch, channels, ds = 101, 4, 128, 2
    src = jax.random.normal(k2, (seq_len, batch, channels), dtype=jnp.float32)
    bias = jax.random.normal(k3, (ds,), dtype=jnp.float32)
    scale = jax.random.uniform(k4, (channels,), dtype=jnp.float32)
    out = jax.block_until_ready(
        downsampled_zipformer2_encoder(src, ds, bias, scale))
    ref = _reference(src, ds, bias, scale)
    assert out.shape == src.shape and out.dtype == src.dtype
    assert jnp.allclose(out, ref, atol=1e-4, rtol=1e-4), "case 2 mismatch"

    print("KERNEL_OK")
</pallas_src>

<mosaic_0001>
module attributes {stable_mosaic.version = 11 : i64} {
  func.func @_downsampled_encoder_kernel(%arg0: i32, %arg1: memref<8x24xf32, #tpu.memory_space<vmem>>, %arg2: memref<24x8xf32, #tpu.memory_space<vmem>>, %arg3: memref<24x64xf32, #tpu.memory_space<vmem>>, %arg4: memref<1x64xf32, #tpu.memory_space<vmem>>, %arg5: memref<24x64xf32, #tpu.memory_space<vmem>>) attributes {dimension_semantics = [#tpu.dimension_semantics<parallel>], iteration_bounds = array<i64: 1>, scalar_prefetch = 0 : i64, scratch_operands = 0 : i64, tpu.core_type = #tpu.core_type<tc>, window_params = [{pipeline_mode = #tpu.pipeline_mode<synchronous>, transform_indices = @transform_0, window_bounds = array<i64: 8, 24>}, {pipeline_mode = #tpu.pipeline_mode<synchronous>, transform_indices = @transform_1, window_bounds = array<i64: 24, 8>}, {transform_indices = @transform_2, window_bounds = array<i64: 24, 64>}, {pipeline_mode = #tpu.pipeline_mode<synchronous>, transform_indices = @transform_3, window_bounds = array<i64: 1, 64>}, {transform_indices = @transform_4, window_bounds = array<i64: 24, 64>}]} {
    %c24_i32 = arith.constant 24 : i32
    %0 = arith.muli %arg0, %c24_i32 : i32
    %c0 = arith.constant 0 : index
    %c0_0 = arith.constant 0 : index
    %1 = vector.load %arg3[%c0, %c0_0] : memref<24x64xf32, #tpu.memory_space<vmem>>, vector<24x64xf32>
    %2 = tpu.iota {dimensions = array<i32: 0>} : vector<24x1xi32>
    %3 = vector.broadcast %0 : i32 to vector<24x1xi32>
    %4 = arith.addi %3, %2 : vector<24x1xi32>
    %c9_i32 = arith.constant 9 : i32
    %5 = arith.subi %c9_i32, %0 : i32
    %c0_i32 = arith.constant 0 : i32
    %c23_i32 = arith.constant 23 : i32
    %6 = arith.maxsi %c0_i32, %5 : i32
    %7 = arith.minsi %c23_i32, %6 : i32
    %8 = arith.index_cast %7 : i32 to index
    %c0_1 = arith.constant 0 : index
    %9 = vector.load %arg3[%8, %c0_1] : memref<24x64xf32, #tpu.memory_space<vmem>>, vector<1x64xf32>
    %c10_i32 = arith.constant 10 : i32
    %10 = vector.broadcast %c10_i32 : i32 to vector<24x1xi32>
    %11 = arith.cmpi slt, %4, %10 : vector<24x1xi32>
    %12 = vector.shape_cast %9 : vector<1x64xf32> to vector<1x64xf32>
    %13 = vector.broadcast %12 : vector<1x64xf32> to vector<24x64xf32>
    %14 = vector.shape_cast %11 : vector<24x1xi1> to vector<24x1xi1>
    %15 = vector.broadcast %14 : vector<24x1xi1> to vector<24x64xi1>
    %16 = arith.select %15, %1, %13 : vector<24x64xi1>, vector<24x64xf32>
    %c0_2 = arith.constant 0 : index
    %c0_3 = arith.constant 0 : index
    %17 = vector.load %arg1[%c0_2, %c0_3] : memref<8x24xf32, #tpu.memory_space<vmem>>, vector<8x24xf32>
    %cst = arith.constant dense<0.000000e+00> : vector<8x64xf32>
    %18 = tpu.matmul %17, %16, %cst {dimension_numbers = #tpu.dot_dimension_numbers<[1], [0], [0], [1], [0, 0, 1, 1], [], []>} : vector<8x24xf32>, vector<24x64xf32>, vector<8x64xf32> -> vector<8x64xf32>
    %c0_4 = arith.constant 0 : index
    %c0_5 = arith.constant 0 : index
    %19 = vector.load %arg2[%c0_4, %c0_5] : memref<24x8xf32, #tpu.memory_space<vmem>>, vector<24x8xf32>
    %cst_6 = arith.constant dense<0.000000e+00> : vector<24x64xf32>
    %20 = tpu.matmul %19, %18, %cst_6 {dimension_numbers = #tpu.dot_dimension_numbers<[1], [0], [0], [1], [0, 0, 1, 1], [], []>} : vector<24x8xf32>, vector<8x64xf32>, vector<24x64xf32> -> vector<24x64xf32>
    %c0_7 = arith.constant 0 : index
    %c0_8 = arith.constant 0 : index
    %21 = vector.load %arg4[%c0_7, %c0_8] : memref<1x64xf32, #tpu.memory_space<vmem>>, vector<1x64xf32>
    %22 = vector.shape_cast %21 : vector<1x64xf32> to vector<1x64xf32>
    %23 = vector.broadcast %22 : vector<1x64xf32> to vector<24x64xf32>
    %24 = arith.subf %20, %16 : vector<24x64xf32>
    %25 = arith.mulf %24, %23 : vector<24x64xf32>
    %26 = arith.addf %16, %25 : vector<24x64xf32>
    %c0_9 = arith.constant 0 : index
    %c0_10 = arith.constant 0 : index
    %27 = vector.load %arg5[%c0_9, %c0_10] : memref<24x64xf32, #tpu.memory_space<vmem>>, vector<24x64xf32>
    tpu.vector_store %arg5[%c0_9, %c0_10], %26 {strides = array<i32>} : memref<24x64xf32, #tpu.memory_space<vmem>>, vector<24x64xf32>,
    return
  }
  func.func @transform_0(%arg0: i32) -> (i32, i32) {
    %c0_i32 = arith.constant 0 : i32
    %c0_i32_0 = arith.constant 0 : i32
    %c0_i32_1 = arith.constant 0 : i32
    return %c0_i32, %c0_i32_0 : i32, i32
  }
  func.func @transform_1(%arg0: i32) -> (i32, i32) {
    %c0_i32 = arith.constant 0 : i32
    %c0_i32_0 = arith.constant 0 : i32
    %c0_i32_1 = arith.constant 0 : i32
    return %c0_i32, %c0_i32_0 : i32, i32
  }
  func.func @transform_2(%arg0: i32) -> (i32, i32) {
    %c0_i32 = arith.constant 0 : i32
    %c0_i32_0 = arith.constant 0 : i32
    return %arg0, %c0_i32 : i32, i32
  }
  func.func @transform_3(%arg0: i32) -> (i32, i32) {
    %c0_i32 = arith.constant 0 : i32
    %c0_i32_0 = arith.constant 0 : i32
    %c0_i32_1 = arith.constant 0 : i32
    return %c0_i32, %c0_i32_0 : i32, i32
  }
  func.func @transform_4(%arg0: i32) -> (i32, i32) {
    %c0_i32 = arith.constant 0 : i32
    %c0_i32_0 = arith.constant 0 : i32
    return %arg0, %c0_i32 : i32, i32
  }
}

</mosaic_0001>

<llo_original>
// kernel: tpu_custom_call.1
$region0: #{tpu_custom_call.1}
  #allocation0 [shape = 'u32[]', space=smem, size = 0x4, offset = 0x4, fixed_abs, tag = 'smem constant byte address 0x4 - core index']
  #allocation1 [shape = 'u32[144,128]{1,0:T(1,128)}', space=vmem, size = 0x12000, scoped, tag = 'internal scratch']
  %s0 = inlined_call_operand.vmem [shape: f32[8,24], index: 0, kind: input, shape index: {}]
  %s1 = inlined_call_operand.vmem [shape: f32[24,8], index: 1, kind: input, shape index: {}]
  %s2 = inlined_call_operand.vmem [shape: f32[10,64], index: 2, kind: input, shape index: {}]
  %s3 = inlined_call_operand.vmem [shape: f32[1,64], index: 3, kind: input, shape index: {}]
  %s4 = inlined_call_operand.hbm [shape: f32[10,64], index: 4, kind: output, shape index: {}]
  %s5 = sld [smem:[#allocation0]]
  $region26: #{tpu_custom_call.1} parent=0
    _
  %s7 = ssub.s32 1, %s5
  %s8 = scalar_select 0, %s7, %s5
  $region1: #{tpu_custom_call.1} parent=0
    #allocation2 [shape = 'u8[12288]{0}', space=vmem, size = 0x3000, scoped, tag = 'output window, operand 0, single buffered']
    #allocation3 [shape = 's32[1]{0}', space=sflag, size = 0x4, scoped, tag = 'scoped memory for tpu_custom_call.1']
    %9 = vsyncpa [#allocation3], 0
    // Predicated region
    $region2: #{tpu_custom_call.1} parent=1 // pred_check
      _
    $region3: #{tpu_custom_call.1} parent=1 // pred_check_branch
      %11 = sbr.rel (0) target = $region5
    $region4: #{tpu_custom_call.1} parent=1 // pred_region
      _
    $region5: #{tpu_custom_call.1} parent=1 // pred_fallthru
      _
    // Predicated region
    $region6: #{tpu_custom_call.1} parent=1 // pred_check
      _
    $region7: #{tpu_custom_call.1} parent=1 // pred_check_branch
      %13 = sbr.rel (0) target = $region9
    $region8: #{tpu_custom_call.1} parent=1 // pred_region
      _
    $region9: #{tpu_custom_call.1} parent=1 // pred_fallthru
      _
    // Predicated region
    $region10: #{tpu_custom_call.1} parent=1 // pred_check
      _
    $region11: #{tpu_custom_call.1} parent=1 // pred_check_branch
      %15 = sbr.rel (0) target = $region13
    $region12: #{tpu_custom_call.1} parent=1 // pred_region
      _
    $region13: #{tpu_custom_call.1} parent=1 // pred_fallthru
      _
    // Predicated region
    $region14: #{tpu_custom_call.1} parent=1 // pred_check
      _
    $region15: #{tpu_custom_call.1} parent=1 // pred_check_branch
      %17 = sbr.rel (0) target = $region17
    $region16: #{tpu_custom_call.1} parent=1 // pred_region
      _
    $region17: #{tpu_custom_call.1} parent=1 // pred_fallthru
      _
    %s18 = smul.u32 0, 24
    %v19 = vld [vmem:[%s2] sm:$0xff]
    %v20 = vld [vmem:[%s2 + $0x8] sm:$0xff]
    %v21 = vld [vmem:[%s2 + $0x10] sm:$0xff]
    %v22 = vlaneseq
    %v23 = vshrl.u32 %v22, 7
    %v24 = vadd.s32 %v23, 8
    %v25 = vadd.s32 %v23, 16
    %v26 = vstv %s18
    %v27 = vadd.s32 %v26, %v23
    %v28 = vadd.s32 %v26, %v24
    %v29 = vadd.s32 %v26, %v25
    %s30 = ssub.s32 9, %s18
    %p31 = scmp.gt.s32.totalorder %s30, 0
    %s32 = scalar_select %p31, %s30, 0
    %p33 = scmp.lt.s32.totalorder %s32, 23
    %s34 = scalar_select %p33, %s32, 23
    %s35 = scalar_lea.vmem %s2, %s34
    %v36 = vld [vmem:[%s35] sm:$0x1]
    %vm37 = vcmp.lt.s32.totalorder %v27, 10
    %vm38 = vcmp.lt.s32.totalorder %v28, 10
    %vm39 = vcmp.lt.s32.totalorder %v29, 10
    %v40 = vlaneseq
    %v41 = vshrl.u32 %v40, 7
    %v42 = vsub.s32 0, %v41
    %v43 = vrot.slane %v36, %v42
    %v44 = vsel %vm37, 1, 0
    %v45 = vsel %vm38, 1, 0
    %v46 = vsel %vm39, 1, 0
    %vm47 = vcmp.eq.s32.totalorder %v44, 1
    %vm48 = vcmp.eq.s32.totalorder %v45, 1
    %vm49 = vcmp.eq.s32.totalorder %v46, 1
    %v50 = vsel %vm47, %v19, %v43
    %v51 = vsel %vm48, %v20, %v43
    %v52 = vsel %vm49, %v21, %v43
    %v53 = vld [vmem:[%s0] sm:$0xff]
    %vm54 = vcmask 195584
    %v56 = vsel %vm54, %v53, 0
    %58 = vmatprep.subr.mxu0 0.0
    %59 = vmatpush1.msra.mxu0 %v50
    %60 = vmatprep.subr.mxu0 0.0
    %61 = vmatpush1.msra.mxu0 %v51
    %62 = vmatprep.subr.mxu0 0.0
    %63 = vmatpush1.msra.mxu0 %v52
    %64 = vmatprep.subr.mxu0 0.0
    %65 = vmatpush1.msra.mxu0 0.0
    %66 = vmatprep.subr.mxu0 0.0
    %67 = vmatpush1.msra.mxu0 0.0
    %68 = vmatprep.subr.mxu0 0.0
    %69 = vmatpush1.msra.mxu0 0.0
    %70 = vmatprep.subr.mxu0 0.0
    %71 = vmatpush1.msra.mxu0 0.0
    %72 = vmatprep.subr.mxu0 0.0
    %73 = vmatpush1.msra.mxu0 0.0
    %74 = vmatprep.subr.mxu0 0.0
    %75 = vmatpush1.msra.mxu0 0.0
    %76 = vmatprep.subr.mxu0 0.0
    %77 = vmatpush1.msra.mxu0 0.0
    %78 = vmatprep.subr.mxu0 0.0
    %79 = vmatpush1.msra.mxu0 0.0
    %80 = vmatprep.subr.mxu0 0.0
    %81 = vmatpush1.msra.mxu0 0.0
    %82 = vmatprep.subr.mxu0 0.0
    %83 = vmatpush1.msra.mxu0 0.0
    %84 = vmatprep.subr.mxu0 0.0
    %85 = vmatpush1.msra.mxu0 0.0
    %86 = vmatprep.subr.mxu0 0.0
    %87 = vmatpush1.msra.mxu0 0.0
    %88 = vmatprep.subr.mxu0 0.0
    %89 = vmatpush1.msra.mxu0 0.0
    %90 = vmatprep.subr.mxu0 0.0
    %91 = vmatpush1.msra.mxu0 0.0
    %92 = vmatprep.subr.mxu0 0.0
    %93 = vmatpush1.msra.mxu0 0.0
    %94 = vmatprep.subr.mxu0 0.0
    %95 = vmatpush1.msra.mxu0 0.0
    %96 = vmatprep.subr.mxu0 0.0
    %97 = vmatpush1.msra.mxu0 0.0
    %98 = vmatprep.subr.mxu0 0.0
    %99 = vmatpush1.msra.mxu0 0.0
    %100 = vmatprep.subr.mxu0 0.0
    %101 = vmatpush1.msra.mxu0 0.0
    %102 = vmatprep.subr.mxu0 0.0
    %103 = vmatpush1.msra.mxu0 0.0
    %104 = vmatprep.subr.mxu0 0.0
    %105 = vmatpush1.msra.mxu0 0.0
    %106 = vmatprep.subr.mxu0 0.0
    %107 = vmatpush1.msra.mxu0 0.0
    %108 = vmatprep.subr.mxu0 0.0
    %109 = vmatpush1.msra.mxu0 0.0
    %110 = vmatprep.subr.mxu0 0.0
    %111 = vmatpush1.msra.mxu0 0.0
    %112 = vmatprep.subr.mxu0 0.0
    %113 = vmatpush1.msra.mxu0 0.0
    %114 = vmatprep.subr.mxu0 0.0
    %115 = vmatpush1.msra.mxu0 0.0
    %116 = vmatprep.subr.mxu0 0.0
    %117 = vmatpush1.msra.mxu0 0.0
    %118 = vmatprep.subr.mxu0 0.0
    %119 = vmatpush1.msra.mxu0 0.0
    %120 = vmatprep.subr.mxu0 0.0
    %121 = vmatpush1.msra.mxu0 0.0
    %122 = vmatprep.mubr.f32.mxu0 0.0
    %123 = vmatmul.mubr.f32.gmra.mrb[0].mxu0 %v56
    %v124 = vpop.f32.mrb[0].mxu0
    %v125 = vadd.f32 0.0, %v124
    %v126 = vpop.f32.mrb[0].mxu0
    %127 = vdwg.mxu0
    %v128 = vld [vmem:[%s1] sm:$0xff]
    %v129 = vld [vmem:[%s1 + $0x8] sm:$0xff]
    %v130 = vld [vmem:[%s1 + $0x10] sm:$0xff]
    %vm131 = vcmask 64512
    %v133 = vsel %vm131, %v128, 0
    %v136 = vsel %vm131, %v129, 0
    %v139 = vsel %vm131, %v130, 0
    %141 = vmatprep.subr.mxu0 0.0
    %142 = vmatpush1.msra.mxu0 %v125
    %143 = vmatprep.subr.mxu0 0.0
    %144 = vmatpush1.msra.mxu0 0.0
    %145 = vmatprep.subr.mxu0 0.0
    %146 = vmatpush1.msra.mxu0 0.0
    %147 = vmatprep.subr.mxu0 0.0
    %148 = vmatpush1.msra.mxu0 0.0
    %149 = vmatprep.subr.mxu0 0.0
    %150 = vmatpush1.msra.mxu0 0.0
    %151 = vmatprep.subr.mxu0 0.0
    %152 = vmatpush1.msra.mxu0 0.0
    %153 = vmatprep.subr.mxu0 0.0
    %154 = vmatpush1.msra.mxu0 0.0
    %155 = vmatprep.subr.mxu0 0.0
    %156 = vmatpush1.msra.mxu0 0.0
    %157 = vmatprep.subr.mxu0 0.0
    %158 = vmatpush1.msra.mxu0 0.0
    %159 = vmatprep.subr.mxu0 0.0
    %160 = vmatpush1.msra.mxu0 0.0
    %161 = vmatprep.subr.mxu0 0.0
    %162 = vmatpush1.msra.mxu0 0.0
    %163 = vmatprep.subr.mxu0 0.0
    %164 = vmatpush1.msra.mxu0 0.0
    %165 = vmatprep.subr.mxu0 0.0
    %166 = vmatpush1.msra.mxu0 0.0
    %167 = vmatprep.subr.mxu0 0.0
    %168 = vmatpush1.msra.mxu0 0.0
    %169 = vmatprep.subr.mxu0 0.0
    %170 = vmatpush1.msra.mxu0 0.0
    %171 = vmatprep.subr.mxu0 0.0
    %172 = vmatpush1.msra.mxu0 0.0
    %173 = vmatprep.subr.mxu0 0.0
    %174 = vmatpush1.msra.mxu0 0.0
    %175 = vmatprep.subr.mxu0 0.0
    %176 = vmatpush1.msra.mxu0 0.0
    %177 = vmatprep.subr.mxu0 0.0
    %178 = vmatpush1.msra.mxu0 0.0
    %179 = vmatprep.subr.mxu0 0.0
    %180 = vmatpush1.msra.mxu0 0.0
    %181 = vmatprep.subr.mxu0 0.0
    %182 = vmatpush1.msra.mxu0 0.0
    %183 = vmatprep.subr.mxu0 0.0
    %184 = vmatpush1.msra.mxu0 0.0
    %185 = vmatprep.subr.mxu0 0.0
    %186 = vmatpush1.msra.mxu0 0.0
    %187 = vmatprep.subr.mxu0 0.0
    %188 = vmatpush1.msra.mxu0 0.0
    %189 = vmatprep.subr.mxu0 0.0
    %190 = vmatpush1.msra.mxu0 0.0
    %191 = vmatprep.subr.mxu0 0.0
    %192 = vmatpush1.msra.mxu0 0.0
    %193 = vmatprep.subr.mxu0 0.0
    %194 = vmatpush1.msra.mxu0 0.0
    %195 = vmatprep.subr.mxu0 0.0
    %196 = vmatpush1.msra.mxu0 0.0
    %197 = vmatprep.subr.mxu0 0.0
    %198 = vmatpush1.msra.mxu0 0.0
    %199 = vmatprep.subr.mxu0 0.0
    %200 = vmatpush1.msra.mxu0 0.0
    %201 = vmatprep.subr.mxu0 0.0
    %202 = vmatpush1.msra.mxu0 0.0
    %203 = vmatprep.subr.mxu0 0.0
    %204 = vmatpush1.msra.mxu0 0.0
    %205 = vmatprep.mubr.f32.mxu0 0.0
    %206 = vmatmul.mubr.f32.gmra.mrb[0].mxu0 %v133
    %v207 = vpop.f32.mrb[0].mxu0
    %v208 = vadd.f32 0.0, %v207
    %v209 = vpop.f32.mrb[0].mxu0
    %210 = vmatprep.mubr.f32.mxu0 0.0
    %211 = vmatmul.mubr.f32.gmra.mrb[0].mxu0 %v136
    %v212 = vpop.f32.mrb[0].mxu0
    %v213 = vadd.f32 0.0, %v212
    %v214 = vpop.f32.mrb[0].mxu0
    %215 = vmatprep.mubr.f32.mxu0 0.0
    %216 = vmatmul.mubr.f32.gmra.mrb[0].mxu0 %v139
    %v217 = vpop.f32.mrb[0].mxu0
    %v218 = vadd.f32 0.0, %v217
    %v219 = vpop.f32.mrb[0].mxu0
    %220 = vdwg.mxu0
    %v221 = vld [vmem:[%s3] sm:$0x1]
    %v223 = vlaneseq
    %v224 = vshrl.u32 %v223, 7
    %v225 = vsub.s32 0, %v224
    %v226 = vrot.slane %v221, %v225
    %v228 = vsub.f32 %v208, %v50
    %v229 = vsub.f32 %v213, %v51
    %v230 = vsub.f32 %v218, %v52
    %v231 = vmul.f32 %v228, %v226
    %v232 = vmul.f32 %v229, %v226
    %v233 = vmul.f32 %v230, %v226
    %v234 = vadd.f32 %v50, %v231
    %v235 = vadd.f32 %v51, %v232
    %v236 = vadd.f32 %v52, %v233
    %vm237 = vcmask 523264
    %238 = vst.msk [vmem:[#allocation2] sm:$0xff] %vm237, %v234
    %239 = vst.msk [vmem:[#allocation2 + $0x8] sm:$0xff] %vm237, %v235
    %240 = vst.msk [vmem:[#allocation2 + $0x10] sm:$0xff] %vm237, %v236
    // Predicated region
    $region18: #{tpu_custom_call.1} parent=1 // pred_check
      _
    $region19: #{tpu_custom_call.1} parent=1 // pred_check_branch
      %242 = sbr.rel (0) target = $region21
    $region20: #{tpu_custom_call.1} parent=1 // pred_region
      %s244 = ssub.s32 384, 256
      %245 = vsyncadd [#allocation3], %s244
      %s246 = sshll.u32 [#allocation2], 4
      %s247 = int_to_ptr.vmem [resolvable:$true] %s246
      %252 = dma.vmem_to_hbm [thread:$0]  %s247, 256, %s4, [#allocation3], 128, 128, 8
    $region21: #{tpu_custom_call.1} parent=1 // pred_fallthru
      _
    // Predicated region
    $region22: #{tpu_custom_call.1} parent=1 // pred_check
      _
    $region23: #{tpu_custom_call.1} parent=1 // pred_check_branch
      %254 = sbr.rel (0) target = $region25
    $region24: #{tpu_custom_call.1} parent=1 // pred_region
      %255 = dma.done [#allocation3], 384
    $region25: #{tpu_custom_call.1} parent=1 // pred_fallthru
      _
    %256 = vsyncpa [#allocation3], 1

</llo_original>
